<compile_context>
chip_gen: v7x
topology: tpu7x:2x2x1
jax: 0.10.0
libtpu: 0.0.40
codegen_flags: <defaults>
</compile_context>

<pallas_src>
import functools

import jax
import jax.numpy as jnp
from jax.experimental import pallas as pl
from jax.experimental.pallas import tpu as pltpu


# --------------------------- hardware introspection --------------------------


@functools.lru_cache(maxsize=1)
def _tpu_hw():
    """Returns (vmem_capacity_bytes, num_tensorcores) with safe fallbacks."""
    kind = ""
    try:
        kind = jax.devices()[0].device_kind.lower()
    except Exception:  # pragma: no cover - defensive
        pass

    vmem_cap = None
    try:
        info = pltpu.get_tpu_info()
        vmem_cap = int(getattr(info, "vmem_capacity_bytes"))
    except Exception:  # pragma: no cover - defensive
        vmem_cap = None
    if not vmem_cap or vmem_cap <= 0:
        vmem_cap = 64 * 1024 * 1024 if "v7" in kind else 128 * 1024 * 1024

    num_tc = 1
    if any(tag in kind for tag in ("v4", "v5p", "v7")):
        num_tc = 2
    elif "v5" in kind and "lite" not in kind and "v5e" not in kind:
        num_tc = 2  # v5p reports "TPU v5"
    return vmem_cap, num_tc


# --------------------------------- kernels -----------------------------------


def _fused_ca_residual_kernel(x_ref, skip_ref, w1t_ref, b1_ref, w2t_ref,
                              b2_ref, o_ref, *, inv_hw):
    # Blocks: x/skip/out (nb, C, HW); weights are tiny f32 tiles.
    # Pooled sum accumulates in f32 regardless of the I/O dtype.
    pooled = jnp.sum(x_ref[...], axis=-1, dtype=jnp.float32) * inv_hw  # (nb, C)
    h = jnp.dot(pooled, w1t_ref[...],
                preferred_element_type=jnp.float32) + b1_ref[...]      # (nb, Cr)
    h = jnp.maximum(h, 0.0)                                            # ReLU
    y = jnp.dot(h, w2t_ref[...],
                preferred_element_type=jnp.float32) + b2_ref[...]      # (nb, C)
    y = jax.nn.sigmoid(y).astype(x_ref.dtype)
    # Channel rescale + fused RCAB residual add, kept in the I/O dtype so no
    # block-sized f32 temporaries are materialized in VMEM.
    o_ref[...] = (x_ref[...] * y[:, :, None] + skip_ref[...]).astype(o_ref.dtype)


def _rescale_residual_kernel(x_ref, skip_ref, y_ref, o_ref):
    # Blocks: x/skip/out (1, C, thw); y (1, C, 1) broadcast along lanes.
    o_ref[...] = (x_ref[...] * y_ref[...] + skip_ref[...]).astype(o_ref.dtype)


# ------------------------------ tiling helpers --------------------------------


def _fused_batch_block(n, c, hw, itemsize, budget, num_tc):
    """Largest batch block for the fused path, or 0 if one image won't fit."""
    # 3 blocks (x, skip, out) double-buffered + one f32 temp for the pooled sum.
    per_image = c * hw * (6 * itemsize + 4)
    nb = int(budget // per_image)
    if nb < 1:
        return 0
    nb = min(nb, n)
    if num_tc > 1 and n > 1:
        # Keep >= num_tc grid steps so the parallel axis can shard across TCs.
        nb = min(nb, pl.cdiv(n, num_tc))
    return max(nb, 1)


def _rescale_hw_tile(c, hw, itemsize, budget):
    """Lane tile (multiple of 128) for the two-pass rescale kernel."""
    per_lane = c * 7 * itemsize  # 3 blocks double-buffered + one temp
    thw = int(budget // max(per_lane, 1))
    if thw >= hw:
        return hw
    return max(128, (thw // 128) * 128)


# ------------------------------ fused CA stage --------------------------------


def ca_layer_residual(x, skip, w1, b1, w2, b2, *, donate_x=False,
                      force_two_pass=False, max_nb=None):
    """out = x * sigmoid(W2 relu(W1 avgpool(x) + b1) + b2) + skip.

    x, skip: (N, C, H, W). w1: (Cr, C), b1: (Cr,), w2: (C, Cr), b2: (C,)
    (squeezed 1x1 Conv2d weights/biases of the PyTorch CALayer).
    """
    N, C, H, W = x.shape
    HW = H * W
    Cr = w1.shape[0]
    itemsize = jnp.dtype(x.dtype).itemsize

    vmem_cap, num_tc = _tpu_hw()
    budget = int(vmem_cap * 0.70)       # headroom for weights / compiler scratch
    vmem_limit = int(vmem_cap * 0.85)

    xr = x.reshape(N, C, HW)
    sr = skip.reshape(N, C, HW)

    # Pre-transpose the tiny 1x1-conv weights (one-time, outside the kernel).
    w1t = w1.T.astype(jnp.float32)                # (C, Cr)
    w2t = w2.T.astype(jnp.float32)                # (Cr, C)
    b1r = b1.reshape(1, Cr).astype(jnp.float32)
    b2r = b2.reshape(1, C).astype(jnp.float32)

    alias = {0: 0} if donate_x else {}

    nb = 0 if force_two_pass else _fused_batch_block(N, C, HW, itemsize,
                                                     budget, num_tc)
    if max_nb is not None and nb:
        nb = min(nb, max_nb)

    if nb:
        # ---- single fused pass: whole image(s) per block -------------------
        kernel = functools.partial(_fused_ca_residual_kernel,
                                   inv_hw=1.0 / float(HW))
        out = pl.pallas_call(
            kernel,
            out_shape=jax.ShapeDtypeStruct((N, C, HW), x.dtype),
            grid_spec=pltpu.PrefetchScalarGridSpec(
                num_scalar_prefetch=0,
                grid=(pl.cdiv(N, nb),),
                in_specs=[
                    pl.BlockSpec((nb, C, HW), lambda n: (n, 0, 0)),   # x
                    pl.BlockSpec((nb, C, HW), lambda n: (n, 0, 0)),   # skip
                    pl.BlockSpec((C, Cr), lambda n: (0, 0)),          # W1^T
                    pl.BlockSpec((1, Cr), lambda n: (0, 0)),          # b1
                    pl.BlockSpec((Cr, C), lambda n: (0, 0)),          # W2^T
                    pl.BlockSpec((1, C), lambda n: (0, 0)),           # b2
                ],
                out_specs=pl.BlockSpec((nb, C, HW), lambda n: (n, 0, 0)),
            ),
            input_output_aliases=alias,
            compiler_params=pltpu.CompilerParams(
                dimension_semantics=("parallel",),
                vmem_limit_bytes=vmem_limit,
            ),
        )(xr, sr, w1t, b1r, w2t, b2r)
    else:
        # ---- two-pass path: image too large for VMEM (e.g. v7x 64 MiB) -----
        # Pass 1 (cheap, negligible FLOPs): channel attention y via XLA.
        pooled = jnp.mean(xr, axis=-1, dtype=jnp.float32)              # (N, C)
        hmid = jnp.maximum(pooled @ w1t + b1r, 0.0)                    # (N, Cr)
        y = jax.nn.sigmoid(hmid @ w2t + b2r).astype(x.dtype)           # (N, C)
        yr = y.reshape(N, C, 1)
        # Pass 2: HW-tiled, lane-dense rescale + residual in Pallas.
        thw = _rescale_hw_tile(C, HW, itemsize, budget)
        out = pl.pallas_call(
            _rescale_residual_kernel,
            out_shape=jax.ShapeDtypeStruct((N, C, HW), x.dtype),
            grid_spec=pltpu.PrefetchScalarGridSpec(
                num_scalar_prefetch=0,
                grid=(N, pl.cdiv(HW, thw)),
                in_specs=[
                    pl.BlockSpec((1, C, thw), lambda n, s: (n, 0, s)),  # x
                    pl.BlockSpec((1, C, thw), lambda n, s: (n, 0, s)),  # skip
                    pl.BlockSpec((1, C, 1), lambda n, s: (n, 0, 0)),    # y
                ],
                out_specs=pl.BlockSpec((1, C, thw), lambda n, s: (n, 0, s)),
            ),
            input_output_aliases=alias,
            compiler_params=pltpu.CompilerParams(
                dimension_semantics=("parallel", "parallel"),
                vmem_limit_bytes=vmem_limit,
            ),
        )(xr, sr, yr)

    return out.reshape(N, C, H, W)


# ---------------- full ResidualGroup forward (Pallas CA stage) ----------------


def conv2d_same(x, w, b):
    # x: (N, C, H, W), w: (Cout, Cin, k, k), b: (Cout,); matches
    # nn.Conv2d(..., padding=kernel_size // 2) for odd kernel sizes.
    out = jax.lax.conv_general_dilated(
        x, w, window_strides=(1, 1), padding="SAME",
        dimension_numbers=("NCHW", "OIHW", "NCHW"))
    return out + b[None, :, None, None]


def ca_layer_ref(x, w1, b1, w2, b2):
    # Pure-JAX reference mirroring PyTorch CALayer semantics.
    pooled = jnp.mean(x, axis=(2, 3))                           # (N, C)
    h = jnp.maximum(pooled @ w1.T + b1[None, :], 0.0)           # (N, Cr)
    y = jax.nn.sigmoid(h @ w2.T + b2[None, :])                  # (N, C)
    return x * y[:, :, None, None]


def rcab_forward(x, p, *, use_pallas=True):
    h = conv2d_same(x, p["conv1_w"], p["conv1_b"])
    h = jnp.maximum(h, 0.0)                                     # act = ReLU
    h = conv2d_same(h, p["conv2_w"], p["conv2_b"])
    if use_pallas:
        # CALayer + "res += x" fused in one Pallas pass; output reuses h's
        # buffer (h is a jit-local temporary, safe to alias).
        return ca_layer_residual(h, x, p["ca_w1"], p["ca_b1"],
                                 p["ca_w2"], p["ca_b2"], donate_x=True)
    return ca_layer_ref(h, p["ca_w1"], p["ca_b1"], p["ca_w2"], p["ca_b2"]) + x


def residual_group_forward(x, params, *, use_pallas=True):
    res = x
    for p in params["rcabs"]:
        res = rcab_forward(res, p, use_pallas=use_pallas)
    res = conv2d_same(res, params["tail_w"], params["tail_b"])
    return res + x


def init_params(key, n_feat, kernel_size, reduction, n_resblocks):
    cr = max(1, n_feat // reduction)
    keys = iter(jax.random.split(key, n_resblocks * 8 + 2))

    def randn(shape, scale):
        return jax.random.normal(next(keys), shape, dtype=jnp.float32) * scale

    rcabs = []
    for _ in range(n_resblocks):
        rcabs.append(dict(
            conv1_w=randn((n_feat, n_feat, kernel_size, kernel_size), 0.05),
            conv1_b=randn((n_feat,), 0.05),
            conv2_w=randn((n_feat, n_feat, kernel_size, kernel_size), 0.05),
            conv2_b=randn((n_feat,), 0.05),
            ca_w1=randn((cr, n_feat), 0.1),      # Conv2d(C, C//r, 1) weight
            ca_b1=randn((cr,), 0.1),
            ca_w2=randn((n_feat, cr), 0.1),      # Conv2d(C//r, C, 1) weight
            ca_b2=randn((n_feat,), 0.1),
        ))
    tail_w = randn((n_feat, n_feat, kernel_size, kernel_size), 0.05)
    tail_b = randn((n_feat,), 0.05)
    return dict(rcabs=rcabs, tail_w=tail_w, tail_b=tail_b)


if __name__ == "__main__":
    N, F, H, W = 2, 32, 16, 16
    kernel_size, reduction, n_resblocks = 3, 8, 2

    key = jax.random.PRNGKey(0)
    kx, kh, kp, kx2, kh2 = jax.random.split(key, 5)
    x = jax.random.normal(kx, (N, F, H, W), dtype=jnp.float32)
    params = init_params(kp, F, kernel_size, reduction, n_resblocks)
    p0 = params["rcabs"][0]

    # 1) Kernel-level check: fused CALayer + residual vs pure-JAX reference.
    h = jax.random.normal(kh, (N, F, H, W), dtype=jnp.float32)
    k_ref = ca_layer_ref(h, p0["ca_w1"], p0["ca_b1"],
                         p0["ca_w2"], p0["ca_b2"]) + x
    k_out = jax.block_until_ready(
        ca_layer_residual(h, x, p0["ca_w1"], p0["ca_b1"],
                          p0["ca_w2"], p0["ca_b2"]))
    assert jnp.allclose(k_out, k_ref, atol=1e-5, rtol=1e-5), "fused CA mismatch"

    # 2) Two-pass (large-image fallback) path on the same data.
    tp_out = jax.block_until_ready(
        ca_layer_residual(h, x, p0["ca_w1"], p0["ca_b1"],
                          p0["ca_w2"], p0["ca_b2"], force_two_pass=True))
    assert jnp.allclose(tp_out, k_ref, atol=1e-5, rtol=1e-5), "two-pass mismatch"

    # 3) bf16 I/O path (halves HBM traffic; pooled sum still accumulates f32).
    bf_out = jax.block_until_ready(
        ca_layer_residual(h.astype(jnp.bfloat16), x.astype(jnp.bfloat16),
                          p0["ca_w1"], p0["ca_b1"], p0["ca_w2"], p0["ca_b2"]))
    assert jnp.allclose(bf_out.astype(jnp.float32), k_ref,
                        atol=6e-2, rtol=6e-2), "bf16 CA mismatch"

    # 4) Awkward shapes: HW not a multiple of 128, N not divisible by nb
    #    (exercises masked tail stores + partial last batch block).
    x2 = jax.random.normal(kx2, (3, F, 15, 15), dtype=jnp.float32)
    h2 = jax.random.normal(kh2, (3, F, 15, 15), dtype=jnp.float32)
    k2_ref = ca_layer_ref(h2, p0["ca_w1"], p0["ca_b1"],
                          p0["ca_w2"], p0["ca_b2"]) + x2
    k2_out = jax.block_until_ready(
        ca_layer_residual(h2, x2, p0["ca_w1"], p0["ca_b1"],
                          p0["ca_w2"], p0["ca_b2"], max_nb=2))
    assert jnp.allclose(k2_out, k2_ref, atol=1e-5, rtol=1e-5), "ragged mismatch"

    # 5) Full ResidualGroup forward (Pallas CALayer stage) vs pure-JAX reference.
    fwd = jax.jit(functools.partial(residual_group_forward, use_pallas=True))
    out = jax.block_until_ready(fwd(x, params))
    ref = residual_group_forward(x, params, use_pallas=False)
    assert out.shape == (N, F, H, W)
    assert jnp.allclose(out, ref, atol=1e-4, rtol=1e-4), "group mismatch"

    print("KERNEL_OK")
</pallas_src>

<mosaic_0001>
module attributes {stable_mosaic.version = 11 : i64} {
  func.func @_fused_ca_residual_kernel(%arg0: i32, %arg1: memref<2x32x256xf32, #tpu.memory_space<vmem>>, %arg2: memref<2x32x256xf32, #tpu.memory_space<vmem>>, %arg3: memref<32x4xf32, #tpu.memory_space<vmem>>, %arg4: memref<1x4xf32, #tpu.memory_space<vmem>>, %arg5: memref<4x32xf32, #tpu.memory_space<vmem>>, %arg6: memref<1x32xf32, #tpu.memory_space<vmem>>, %arg7: memref<2x32x256xf32, #tpu.memory_space<vmem>>) attributes {dimension_semantics = [#tpu.dimension_semantics<parallel>], iteration_bounds = array<i64: 1>, scalar_prefetch = 0 : i64, scratch_operands = 0 : i64, tpu.core_type = #tpu.core_type<tc>, window_params = [{transform_indices = @transform_0, window_bounds = array<i64: 2, 32, 256>}, {transform_indices = @transform_1, window_bounds = array<i64: 2, 32, 256>}, {pipeline_mode = #tpu.pipeline_mode<synchronous>, transform_indices = @transform_2, window_bounds = array<i64: 32, 4>}, {pipeline_mode = #tpu.pipeline_mode<synchronous>, transform_indices = @transform_3, window_bounds = array<i64: 1, 4>}, {pipeline_mode = #tpu.pipeline_mode<synchronous>, transform_indices = @transform_4, window_bounds = array<i64: 4, 32>}, {pipeline_mode = #tpu.pipeline_mode<synchronous>, transform_indices = @transform_5, window_bounds = array<i64: 1, 32>}, {transform_indices = @transform_6, window_bounds = array<i64: 2, 32, 256>}]} {
    %c0 = arith.constant 0 : index
    %c0_0 = arith.constant 0 : index
    %c0_1 = arith.constant 0 : index
    %0 = vector.load %arg1[%c0, %c0_0, %c0_1] : memref<2x32x256xf32, #tpu.memory_space<vmem>>, vector<2x32x256xf32>
    %cst = arith.constant dense<0.000000e+00> : vector<2x32xf32>
    %1 = vector.multi_reduction <add>, %0, %cst [2] : vector<2x32x256xf32> to vector<2x32xf32>
    %cst_2 = arith.constant 3.906250e-03 : f32
    %2 = vector.broadcast %cst_2 : f32 to vector<2x32xf32>
    %3 = arith.mulf %1, %2 : vector<2x32xf32>
    %c0_3 = arith.constant 0 : index
    %c0_4 = arith.constant 0 : index
    %4 = vector.load %arg3[%c0_3, %c0_4] : memref<32x4xf32, #tpu.memory_space<vmem>>, vector<32x4xf32>
    %cst_5 = arith.constant dense<0.000000e+00> : vector<2x4xf32>
    %5 = tpu.matmul %3, %4, %cst_5 {dimension_numbers = #tpu.dot_dimension_numbers<[1], [0], [0], [1], [0, 0, 1, 1], [], []>} : vector<2x32xf32>, vector<32x4xf32>, vector<2x4xf32> -> vector<2x4xf32>
    %c0_6 = arith.constant 0 : index
    %c0_7 = arith.constant 0 : index
    %6 = vector.load %arg4[%c0_6, %c0_7] : memref<1x4xf32, #tpu.memory_space<vmem>>, vector<1x4xf32>
    %7 = vector.broadcast %6 : vector<1x4xf32> to vector<2x4xf32>
    %8 = arith.addf %5, %7 : vector<2x4xf32>
    %cst_8 = arith.constant 0.000000e+00 : f32
    %9 = vector.broadcast %cst_8 : f32 to vector<2x4xf32>
    %10 = arith.maximumf %8, %9 : vector<2x4xf32>
    %c0_9 = arith.constant 0 : index
    %c0_10 = arith.constant 0 : index
    %11 = vector.load %arg5[%c0_9, %c0_10] : memref<4x32xf32, #tpu.memory_space<vmem>>, vector<4x32xf32>
    %cst_11 = arith.constant dense<0.000000e+00> : vector<2x32xf32>
    %12 = tpu.matmul %10, %11, %cst_11 {dimension_numbers = #tpu.dot_dimension_numbers<[1], [0], [0], [1], [0, 0, 1, 1], [], []>} : vector<2x4xf32>, vector<4x32xf32>, vector<2x32xf32> -> vector<2x32xf32>
    %c0_12 = arith.constant 0 : index
    %c0_13 = arith.constant 0 : index
    %13 = vector.load %arg6[%c0_12, %c0_13] : memref<1x32xf32, #tpu.memory_space<vmem>>, vector<1x32xf32>
    %14 = vector.broadcast %13 : vector<1x32xf32> to vector<2x32xf32>
    %15 = arith.addf %12, %14 : vector<2x32xf32>
    %16 = arith.negf %15 : vector<2x32xf32>
    %17 = math.exp %16 : vector<2x32xf32>
    %cst_14 = arith.constant 1.000000e+00 : f32
    %18 = vector.broadcast %cst_14 : f32 to vector<2x32xf32>
    %19 = arith.addf %18, %17 : vector<2x32xf32>
    %20 = arith.divf %18, %19 : vector<2x32xf32>
    %c0_15 = arith.constant 0 : index
    %c0_16 = arith.constant 0 : index
    %c0_17 = arith.constant 0 : index
    %21 = vector.load %arg1[%c0_15, %c0_16, %c0_17] : memref<2x32x256xf32, #tpu.memory_space<vmem>>, vector<2x32x256xf32>
    %22 = vector.shape_cast %20 : vector<2x32xf32> to vector<2x32x1xf32>
    %23 = vector.broadcast %22 : vector<2x32x1xf32> to vector<2x32x256xf32>
    %24 = arith.mulf %21, %23 : vector<2x32x256xf32>
    %c0_18 = arith.constant 0 : index
    %c0_19 = arith.constant 0 : index
    %c0_20 = arith.constant 0 : index
    %25 = vector.load %arg2[%c0_18, %c0_19, %c0_20] : memref<2x32x256xf32, #tpu.memory_space<vmem>>, vector<2x32x256xf32>
    %26 = arith.addf %24, %25 : vector<2x32x256xf32>
    %c0_21 = arith.constant 0 : index
    %c0_22 = arith.constant 0 : index
    %c0_23 = arith.constant 0 : index
    %27 = vector.load %arg7[%c0_21, %c0_22, %c0_23] : memref<2x32x256xf32, #tpu.memory_space<vmem>>, vector<2x32x256xf32>
    tpu.vector_store %arg7[%c0_21, %c0_22, %c0_23], %26 {strides = array<i32>} : memref<2x32x256xf32, #tpu.memory_space<vmem>>, vector<2x32x256xf32>,
    return
  }
  func.func @transform_0(%arg0: i32) -> (i32, i32, i32) {
    %c0_i32 = arith.constant 0 : i32
    %c0_i32_0 = arith.constant 0 : i32
    %c0_i32_1 = arith.constant 0 : i32
    return %arg0, %c0_i32, %c0_i32_0 : i32, i32, i32
  }
  func.func @transform_1(%arg0: i32) -> (i32, i32, i32) {
    %c0_i32 = arith.constant 0 : i32
    %c0_i32_0 = arith.constant 0 : i32
    %c0_i32_1 = arith.constant 0 : i32
    return %arg0, %c0_i32, %c0_i32_0 : i32, i32, i32
  }
  func.func @transform_2(%arg0: i32) -> (i32, i32) {
    %c0_i32 = arith.constant 0 : i32
    %c0_i32_0 = arith.constant 0 : i32
    %c0_i32_1 = arith.constant 0 : i32
    return %c0_i32, %c0_i32_0 : i32, i32
  }
  func.func @transform_3(%arg0: i32) -> (i32, i32) {
    %c0_i32 = arith.constant 0 : i32
    %c0_i32_0 = arith.constant 0 : i32
    %c0_i32_1 = arith.constant 0 : i32
    return %c0_i32, %c0_i32_0 : i32, i32
  }
  func.func @transform_4(%arg0: i32) -> (i32, i32) {
    %c0_i32 = arith.constant 0 : i32
    %c0_i32_0 = arith.constant 0 : i32
    %c0_i32_1 = arith.constant 0 : i32
    return %c0_i32, %c0_i32_0 : i32, i32
  }
  func.func @transform_5(%arg0: i32) -> (i32, i32) {
    %c0_i32 = arith.constant 0 : i32
    %c0_i32_0 = arith.constant 0 : i32
    %c0_i32_1 = arith.constant 0 : i32
    return %c0_i32, %c0_i32_0 : i32, i32
  }
  func.func @transform_6(%arg0: i32) -> (i32, i32, i32) {
    %c0_i32 = arith.constant 0 : i32
    %c0_i32_0 = arith.constant 0 : i32
    %c0_i32_1 = arith.constant 0 : i32
    return %arg0, %c0_i32, %c0_i32_0 : i32, i32, i32
  }
}

</mosaic_0001>

<llo_original>
// kernel: tpu_custom_call.1
$region0: #{tpu_custom_call.1}
  #allocation0 [shape = 'u32[]', space=smem, size = 0x4, offset = 0x4, fixed_abs, tag = 'smem constant byte address 0x4 - core index']
  #allocation1 [shape = 'u32[144,128]{1,0:T(1,128)}', space=vmem, size = 0x12000, scoped, tag = 'internal scratch']
  %s0 = inlined_call_operand.hbm [shape: f32[2,32,256], index: 0, kind: input, shape index: {}]
  %s1 = inlined_call_operand.hbm [shape: f32[2,32,256], index: 1, kind: input, shape index: {}]
  %s2 = inlined_call_operand.hbm [shape: f32[32,4], index: 2, kind: input, shape index: {}]
  %s3 = inlined_call_operand.hbm [shape: f32[1,4], index: 3, kind: input, shape index: {}]
  %s4 = inlined_call_operand.hbm [shape: f32[4,32], index: 4, kind: input, shape index: {}]
  %s5 = inlined_call_operand.hbm [shape: f32[1,32], index: 5, kind: input, shape index: {}]
  %s6 = inlined_call_operand.hbm [shape: f32[2,32,256], index: 6, kind: output, shape index: {}]
  %s7 = sld [smem:[#allocation0]]
  $region58: #{tpu_custom_call.1} parent=0
    _
  %s9 = ssub.s32 1, %s7
  %s10 = scalar_select 0, %s9, %s7
  $region1: #{tpu_custom_call.1} parent=0
    #allocation2 [shape = 'u8[65536]{0}', space=vmem, size = 0x10000, scoped, tag = 'input window, operand 0, single buffered']
    #allocation3 [shape = 's32[1]{0}', space=sflag, size = 0x4, scoped, tag = 'scoped memory for tpu_custom_call.1']
    #allocation4 [shape = 's32[1]{0}', space=sflag, size = 0x4, scoped, tag = 'scoped memory for tpu_custom_call.1']
    #allocation5 [shape = 'u8[65536]{0}', space=vmem, size = 0x10000, scoped, tag = 'input window, operand 1, single buffered']
    #allocation6 [shape = 's32[1]{0}', space=sflag, size = 0x4, scoped, tag = 'scoped memory for tpu_custom_call.1']
    #allocation7 [shape = 'u8[16384]{0}', space=vmem, size = 0x4000, scoped, tag = 'input window, operand 2, single buffered']
    #allocation8 [shape = 'u8[512]{0}', space=vmem, size = 0x400, scoped, tag = 'input window, operand 3, single buffered']
    #allocation9 [shape = 's32[1]{0}', space=sflag, size = 0x4, scoped, tag = 'scoped memory for tpu_custom_call.1']
    #allocation10 [shape = 'u8[2048]{0}', space=vmem, size = 0x800, scoped, tag = 'input window, operand 4, single buffered']
    #allocation11 [shape = 'u8[512]{0}', space=vmem, size = 0x400, scoped, tag = 'input window, operand 5, single buffered']
    #allocation12 [shape = 's32[1]{0}', space=sflag, size = 0x4, scoped, tag = 'scoped memory for tpu_custom_call.1']
    #allocation13 [shape = 'u8[65536]{0}', space=vmem, size = 0x10000, scoped, tag = 'output window, operand 0, single buffered']
    %11 = vsyncpa [#allocation3], 0
    %12 = vsyncpa [#allocation6], 0
    %13 = vsyncpa [#allocation9], 0
    %14 = vsyncpa [#allocation12], 0
    %15 = vsyncpa [#allocation4], 0
    // Predicated region
    $region2: #{tpu_custom_call.1} parent=1 // pred_check
      _
    $region3: #{tpu_custom_call.1} parent=1 // pred_check_branch
      %17 = sbr.rel (0) target = $region5
    $region4: #{tpu_custom_call.1} parent=1 // pred_region
      %s19 = ssub.s32 2048, 2048
      %20 = vsyncadd [#allocation3], %s19
      %s21 = sshll.u32 [#allocation2], 4
      %s22 = int_to_ptr.vmem [resolvable:$true] %s21
      %27 = dma.hbm_to_vmem [thread:$0]  %s0, 2048, %s22, [#allocation3], 256, 256, 16
    $region5: #{tpu_custom_call.1} parent=1 // pred_fallthru
      _
    // Predicated region
    $region6: #{tpu_custom_call.1} parent=1 // pred_check
      _
    $region7: #{tpu_custom_call.1} parent=1 // pred_check_branch
      %29 = sbr.rel (0) target = $region9
    $region8: #{tpu_custom_call.1} parent=1 // pred_region
      %s31 = ssub.s32 2048, 2048
      %32 = vsyncadd [#allocation6], %s31
      %s33 = sshll.u32 [#allocation5], 4
      %s34 = int_to_ptr.vmem [resolvable:$true] %s33
      %39 = dma.hbm_to_vmem [thread:$0]  %s1, 2048, %s34, [#allocation6], 256, 256, 16
    $region9: #{tpu_custom_call.1} parent=1 // pred_fallthru
      _
    // Predicated region
    $region10: #{tpu_custom_call.1} parent=1 // pred_check
      _
    $region11: #{tpu_custom_call.1} parent=1 // pred_check_branch
      %41 = sbr.rel (0) target = $region13
    $region12: #{tpu_custom_call.1} parent=1 // pred_region
      %s43 = ssub.s32 512, 512
      %44 = vsyncadd [#allocation6], %s43
      %s45 = sshll.u32 [#allocation7], 4
      %s46 = int_to_ptr.vmem [resolvable:$true] %s45
      %51 = dma.hbm_to_vmem [thread:$0]  %s2, 512, %s46, [#allocation6], 128, 128, 8
    $region13: #{tpu_custom_call.1} parent=1 // pred_fallthru
      _
    // Predicated region
    $region14: #{tpu_custom_call.1} parent=1 // pred_check
      _
    $region15: #{tpu_custom_call.1} parent=1 // pred_check_branch
      %53 = sbr.rel (0) target = $region17
    $region16: #{tpu_custom_call.1} parent=1 // pred_region
      %s55 = ssub.s32 16, 16
      %56 = vsyncadd [#allocation9], %s55
      %s58 = sshll.u32 [#allocation8], 4
      %s59 = int_to_ptr.vmem [resolvable:$true] %s58
      %61 = dma.hbm_to_vmem [thread:$0]  %s3, 16, %s59, [#allocation9]
    $region17: #{tpu_custom_call.1} parent=1 // pred_fallthru
      _
    // Predicated region
    $region18: #{tpu_custom_call.1} parent=1 // pred_check
      _
    $region19: #{tpu_custom_call.1} parent=1 // pred_check_branch
      %63 = sbr.rel (0) target = $region21
    $region20: #{tpu_custom_call.1} parent=1 // pred_region
      %s65 = ssub.s32 64, 64
      %66 = vsyncadd [#allocation9], %s65
      %s68 = sshll.u32 [#allocation10], 4
      %s69 = int_to_ptr.vmem [resolvable:$true] %s68
      %71 = dma.hbm_to_vmem [thread:$0]  %s4, 64, %s69, [#allocation9]
    $region21: #{tpu_custom_call.1} parent=1 // pred_fallthru
      _
    // Predicated region
    $region22: #{tpu_custom_call.1} parent=1 // pred_check
      _
    $region23: #{tpu_custom_call.1} parent=1 // pred_check_branch
      %73 = sbr.rel (0) target = $region25
    $region24: #{tpu_custom_call.1} parent=1 // pred_region
      %s75 = ssub.s32 16, 16
      %76 = vsyncadd [#allocation12], %s75
      %s78 = sshll.u32 [#allocation11], 4
      %s79 = int_to_ptr.vmem [resolvable:$true] %s78
      %81 = dma.hbm_to_vmem [thread:$0]  %s5, 16, %s79, [#allocation12]
    $region25: #{tpu_custom_call.1} parent=1 // pred_fallthru
      _
    // Predicated region
    $region26: #{tpu_custom_call.1} parent=1 // pred_check
      _
    $region27: #{tpu_custom_call.1} parent=1 // pred_check_branch
      %83 = sbr.rel (0) target = $region29
    $region28: #{tpu_custom_call.1} parent=1 // pred_region
      %84 = dma.done [#allocation3], 2048
    $region29: #{tpu_custom_call.1} parent=1 // pred_fallthru
      _
    // Predicated region
    $region30: #{tpu_custom_call.1} parent=1 // pred_check
      _
    $region31: #{tpu_custom_call.1} parent=1 // pred_check_branch
      %86 = sbr.rel (0) target = $region33
    $region32: #{tpu_custom_call.1} parent=1 // pred_region
      %87 = dma.done [#allocation6], 2048
    $region33: #{tpu_custom_call.1} parent=1 // pred_fallthru
      _
    // Predicated region
    $region34: #{tpu_custom_call.1} parent=1 // pred_check
      _
    $region35: #{tpu_custom_call.1} parent=1 // pred_check_branch
      %89 = sbr.rel (0) target = $region37
    $region36: #{tpu_custom_call.1} parent=1 // pred_region
      %90 = dma.done [#allocation6], 512
    $region37: #{tpu_custom_call.1} parent=1 // pred_fallthru
      _
    // Predicated region
    $region38: #{tpu_custom_call.1} parent=1 // pred_check
      _
    $region39: #{tpu_custom_call.1} parent=1 // pred_check_branch
      %92 = sbr.rel (0) target = $region41
    $region40: #{tpu_custom_call.1} parent=1 // pred_region
      %93 = dma.done [#allocation9], 16
    $region41: #{tpu_custom_call.1} parent=1 // pred_fallthru
      _
    // Predicated region
    $region42: #{tpu_custom_call.1} parent=1 // pred_check
      _
    $region43: #{tpu_custom_call.1} parent=1 // pred_check_branch
      %95 = sbr.rel (0) target = $region45
    $region44: #{tpu_custom_call.1} parent=1 // pred_region
      %96 = dma.done [#allocation9], 64
    $region45: #{tpu_custom_call.1} parent=1 // pred_fallthru
      _
    // Predicated region
    $region46: #{tpu_custom_call.1} parent=1 // pred_check
      _
    $region47: #{tpu_custom_call.1} parent=1 // pred_check_branch
      %98 = sbr.rel (0) target = $region49
    $region48: #{tpu_custom_call.1} parent=1 // pred_region
      %99 = dma.done [#allocation12], 16
    $region49: #{tpu_custom_call.1} parent=1 // pred_fallthru
      _
    %v100 = vld [vmem:[#allocation2] sm:$0xff]
    %v101 = vld [vmem:[#allocation2 + $0x8] sm:$0xff]
    %v102 = vld [vmem:[#allocation2 + $0x10] sm:$0xff]
    %v103 = vld [vmem:[#allocation2 + $0x18] sm:$0xff]
    %v104 = vld [vmem:[#allocation2 + $0x20] sm:$0xff]
    %v105 = vld [vmem:[#allocation2 + $0x28] sm:$0xff]
    %v106 = vld [vmem:[#allocation2 + $0x30] sm:$0xff]
    %v107 = vld [vmem:[#allocation2 + $0x38] sm:$0xff]
    %v108 = vld [vmem:[#allocation2 + $0x40] sm:$0xff]
    %v109 = vld [vmem:[#allocation2 + $0x48] sm:$0xff]
    %v110 = vld [vmem:[#allocation2 + $0x50] sm:$0xff]
    %v111 = vld [vmem:[#allocation2 + $0x58] sm:$0xff]
    %v112 = vld [vmem:[#allocation2 + $0x60] sm:$0xff]
    %v113 = vld [vmem:[#allocation2 + $0x68] sm:$0xff]
    %v114 = vld [vmem:[#allocation2 + $0x70] sm:$0xff]
    %v115 = vld [vmem:[#allocation2 + $0x78] sm:$0xff]
    %v116 = vadd.f32 %v100, %v101
    %117 = vadd.xlane.f32.xlu0 %v116
    %v118 = vpop.xlane.xlu0 %117
    %v119 = vadd.f32 %v102, %v103
    %120 = vadd.xlane.f32.xlu0 %v119
    %v121 = vpop.xlane.xlu0 %120
    %v122 = vadd.f32 %v104, %v105
    %123 = vadd.xlane.f32.xlu0 %v122
    %v124 = vpop.xlane.xlu0 %123
    %v125 = vadd.f32 %v106, %v107
    %126 = vadd.xlane.f32.xlu0 %v125
    %v127 = vpop.xlane.xlu0 %126
    %v128 = vadd.f32 %v108, %v109
    %129 = vadd.xlane.f32.xlu0 %v128
    %v130 = vpop.xlane.xlu0 %129
    %v131 = vadd.f32 %v110, %v111
    %132 = vadd.xlane.f32.xlu0 %v131
    %v133 = vpop.xlane.xlu0 %132
    %v134 = vadd.f32 %v112, %v113
    %135 = vadd.xlane.f32.xlu0 %v134
    %v136 = vpop.xlane.xlu0 %135
    %v137 = vadd.f32 %v114, %v115
    %138 = vadd.xlane.f32.xlu0 %v137
    %v139 = vpop.xlane.xlu0 %138
    %v140 = vmul.f32 %v118, 0.00390625
    %v141 = vmul.f32 %v121, 0.00390625
    %v142 = vmul.f32 %v124, 0.00390625
    %v143 = vmul.f32 %v127, 0.00390625
    %v144 = vmul.f32 %v130, 0.00390625
    %v145 = vmul.f32 %v133, 0.00390625
    %v146 = vmul.f32 %v136, 0.00390625
    %v147 = vmul.f32 %v139, 0.00390625
    %v148 = vld [vmem:[#allocation7] sm:$0xff]
    %v149 = vld [vmem:[#allocation7 + $0x8] sm:$0xff]
    %v150 = vld [vmem:[#allocation7 + $0x10] sm:$0xff]
    %v151 = vld [vmem:[#allocation7 + $0x18] sm:$0xff]
    %v152 = vld [vmem:[#allocation8] sm:$0x1]
    %v154 = vlaneseq
    %v155 = vshrl.u32 %v154, 7
    %v156 = vsub.s32 0, %v155
    %v157 = vrot.slane %v152, %v156
    %v167 = vlaneseq
    %v168 = vand.u32 %v167, 127
    %v169 = vlaneseq
    %v170 = vshrl.u32 %v169, 7
    %v171 = vsub.s32 %v168, %v170
    %v172 = vrot.slane %v140, %v171
    %v173 = vadd.s32 %v168, 4294967288
    %v174 = vlaneseq
    %v175 = vshrl.u32 %v174, 7
    %v176 = vsub.s32 %v173, %v175
    %v177 = vrot.slane %v141, %v176
    %vm178 = vcmask 130112
    %v179 = vsel %vm178, %v177, %v172
    %v180 = vadd.s32 %v168, 4294967280
    %v181 = vlaneseq
    %v182 = vshrl.u32 %v181, 7
    %v183 = vsub.s32 %v180, %v182
    %v184 = vrot.slane %v142, %v183
    %vm185 = vcmask 195712
    %v186 = vsel %vm185, %v184, %v179
    %v187 = vadd.s32 %v168, 4294967272
    %v188 = vlaneseq
    %v189 = vshrl.u32 %v188, 7
    %v190 = vsub.s32 %v187, %v189
    %v191 = vrot.slane %v143, %v190
    %vm192 = vcmask 261312
    %v193 = vsel %vm192, %v191, %v186
    %v194 = vlaneseq
    %v195 = vshrl.u32 %v194, 7
    %v196 = vsub.s32 %v168, %v195
    %v197 = vrot.slane %v144, %v196
    %v198 = vlaneseq
    %v199 = vshrl.u32 %v198, 7
    %v200 = vsub.s32 %v173, %v199
    %v201 = vrot.slane %v145, %v200
    %v202 = vsel %vm178, %v201, %v197
    %v203 = vlaneseq
    %v204 = vshrl.u32 %v203, 7
    %v205 = vsub.s32 %v180, %v204
    %v206 = vrot.slane %v146, %v205
    %v207 = vsel %vm185, %v206, %v202
    %v208 = vlaneseq
    %v209 = vshrl.u32 %v208, 7
    %v210 = vsub.s32 %v187, %v209
    %v211 = vrot.slane %v147, %v210
    %v212 = vsel %vm192, %v211, %v207
    %vm213 = vcmask 1041409
    %v214 = vsel %vm213, %v212, %v193
    %vm215 = vcmask 261120
    %v216 = vsel %vm215, %v214, 0
    %218 = vmatprep.subr.mxu0 0.0
    %219 = vmatpush1.msra.mxu0 %v148
    %220 = vmatprep.subr.mxu0 0.0
    %221 = vmatpush1.msra.mxu0 %v149
    %222 = vmatprep.subr.mxu0 0.0
    %223 = vmatpush1.msra.mxu0 %v150
    %224 = vmatprep.subr.mxu0 0.0
    %225 = vmatpush1.msra.mxu0 %v151
    %226 = vmatprep.subr.mxu0 0.0
    %227 = vmatpush1.msra.mxu0 0.0
    %228 = vmatprep.subr.mxu0 0.0
    %229 = vmatpush1.msra.mxu0 0.0
    %230 = vmatprep.subr.mxu0 0.0
    %231 = vmatpush1.msra.mxu0 0.0
    %232 = vmatprep.subr.mxu0 0.0
    %233 = vmatpush1.msra.mxu0 0.0
    %234 = vmatprep.subr.mxu0 0.0
    %235 = vmatpush1.msra.mxu0 0.0
    %236 = vmatprep.subr.mxu0 0.0
    %237 = vmatpush1.msra.mxu0 0.0
    %238 = vmatprep.subr.mxu0 0.0
    %239 = vmatpush1.msra.mxu0 0.0
    %240 = vmatprep.subr.mxu0 0.0
    %241 = vmatpush1.msra.mxu0 0.0
    %242 = vmatprep.subr.mxu0 0.0
    %243 = vmatpush1.msra.mxu0 0.0
    %244 = vmatprep.subr.mxu0 0.0
    %245 = vmatpush1.msra.mxu0 0.0
    %246 = vmatprep.subr.mxu0 0.0
    %247 = vmatpush1.msra.mxu0 0.0
    %248 = vmatprep.subr.mxu0 0.0
    %249 = vmatpush1.msra.mxu0 0.0
    %250 = vmatprep.subr.mxu0 0.0
    %251 = vmatpush1.msra.mxu0 0.0
    %252 = vmatprep.subr.mxu0 0.0
    %253 = vmatpush1.msra.mxu0 0.0
    %254 = vmatprep.subr.mxu0 0.0
    %255 = vmatpush1.msra.mxu0 0.0
    %256 = vmatprep.subr.mxu0 0.0
    %257 = vmatpush1.msra.mxu0 0.0
    %258 = vmatprep.subr.mxu0 0.0
    %259 = vmatpush1.msra.mxu0 0.0
    %260 = vmatprep.subr.mxu0 0.0
    %261 = vmatpush1.msra.mxu0 0.0
    %262 = vmatprep.subr.mxu0 0.0
    %263 = vmatpush1.msra.mxu0 0.0
    %264 = vmatprep.subr.mxu0 0.0
    %265 = vmatpush1.msra.mxu0 0.0
    %266 = vmatprep.subr.mxu0 0.0
    %267 = vmatpush1.msra.mxu0 0.0
    %268 = vmatprep.subr.mxu0 0.0
    %269 = vmatpush1.msra.mxu0 0.0
    %270 = vmatprep.subr.mxu0 0.0
    %271 = vmatpush1.msra.mxu0 0.0
    %272 = vmatprep.subr.mxu0 0.0
    %273 = vmatpush1.msra.mxu0 0.0
    %274 = vmatprep.subr.mxu0 0.0
    %275 = vmatpush1.msra.mxu0 0.0
    %276 = vmatprep.subr.mxu0 0.0
    %277 = vmatpush1.msra.mxu0 0.0
    %278 = vmatprep.subr.mxu0 0.0
    %279 = vmatpush1.msra.mxu0 0.0
    %280 = vmatprep.subr.mxu0 0.0
    %281 = vmatpush1.msra.mxu0 0.0
    %282 = vmatprep.mubr.f32.mxu0 0.0
    %283 = vmatmul.mubr.f32.gmra.mrb[0].mxu0 %v216
    %v284 = vpop.f32.mrb[0].mxu0
    %v285 = vadd.f32 %v157, %v284
    %v286 = vpop.f32.mrb[0].mxu0
    %287 = vdwg.mxu0
    %v288 = vmax.f32 %v285, 0.0
    %v289 = vld [vmem:[#allocation10] sm:$0xf]
    %v290 = vld [vmem:[#allocation11] sm:$0x1]
    %v292 = vlaneseq
    %v293 = vshrl.u32 %v292, 7
    %v294 = vsub.s32 0, %v293
    %v295 = vrot.slane %v290, %v294
    %vm297 = vcmask 31744
    %v299 = vsel %vm297, %v288, 0
    %vm301 = vcmask 1043456
    %v303 = vsel %vm301, %v289, 0
    %305 = vmatprep.subr.mxu0 0.0
    %306 = vmatpush1.msra.mxu0 %v303
    %307 = vmatprep.subr.mxu0 0.0
    %308 = vmatpush1.msra.mxu0 0.0
    %309 = vmatprep.subr.mxu0 0.0
    %310 = vmatpush1.msra.mxu0 0.0
    %311 = vmatprep.subr.mxu0 0.0
    %312 = vmatpush1.msra.mxu0 0.0
    %313 = vmatprep.subr.mxu0 0.0
    %314 = vmatpush1.msra.mxu0 0.0
    %315 = vmatprep.subr.mxu0 0.0
    %316 = vmatpush1.msra.mxu0 0.0
    %317 = vmatprep.subr.mxu0 0.0
    %318 = vmatpush1.msra.mxu0 0.0
    %319 = vmatprep.subr.mxu0 0.0
    %320 = vmatpush1.msra.mxu0 0.0
    %321 = vmatprep.subr.mxu0 0.0
    %322 = vmatpush1.msra.mxu0 0.0
    %323 = vmatprep.subr.mxu0 0.0
    %324 = vmatpush1.msra.mxu0 0.0
    %325 = vmatprep.subr.mxu0 0.0
    %326 = vmatpush1.msra.mxu0 0.0
    %327 = vmatprep.subr.mxu0 0.0
    %328 = vmatpush1.msra.mxu0 0.0
    %329 = vmatprep.subr.mxu0 0.0
    %330 = vmatpush1.msra.mxu0 0.0
    %331 = vmatprep.subr.mxu0 0.0
    %332 = vmatpush1.msra.mxu0 0.0
    %333 = vmatprep.subr.mxu0 0.0
    %334 = vmatpush1.msra.mxu0 0.0
    %335 = vmatprep.subr.mxu0 0.0
    %336 = vmatpush1.msra.mxu0 0.0
    %337 = vmatprep.subr.mxu0 0.0
    %338 = vmatpush1.msra.mxu0 0.0
    %339 = vmatprep.subr.mxu0 0.0
    %340 = vmatpush1.msra.mxu0 0.0
    %341 = vmatprep.subr.mxu0 0.0
    %342 = vmatpush1.msra.mxu0 0.0
    %343 = vmatprep.subr.mxu0 0.0
    %344 = vmatpush1.msra.mxu0 0.0
    %345 = vmatprep.subr.mxu0 0.0
    %346 = vmatpush1.msra.mxu0 0.0
    %347 = vmatprep.subr.mxu0 0.0
    %348 = vmatpush1.msra.mxu0 0.0
    %349 = vmatprep.subr.mxu0 0.0
    %350 = vmatpush1.msra.mxu0 0.0
    %351 = vmatprep.subr.mxu0 0.0
    %352 = vmatpush1.msra.mxu0 0.0
    %353 = vmatprep.subr.mxu0 0.0
    %354 = vmatpush1.msra.mxu0 0.0
    %355 = vmatprep.subr.mxu0 0.0
    %356 = vmatpush1.msra.mxu0 0.0
    %357 = vmatprep.subr.mxu0 0.0
    %358 = vmatpush1.msra.mxu0 0.0
    %359 = vmatprep.subr.mxu0 0.0
    %360 = vmatpush1.msra.mxu0 0.0
    %361 = vmatprep.subr.mxu0 0.0
    %362 = vmatpush1.msra.mxu0 0.0
    %363 = vmatprep.subr.mxu0 0.0
    %364 = vmatpush1.msra.mxu0 0.0
    %365 = vmatprep.subr.mxu0 0.0
    %366 = vmatpush1.msra.mxu0 0.0
    %367 = vmatprep.subr.mxu0 0.0
    %368 = vmatpush1.msra.mxu0 0.0
    %369 = vmatprep.mubr.f32.mxu0 0.0
    %370 = vmatmul.mubr.f32.gmra.mrb[0].mxu0 %v299
    %v371 = vpop.f32.mrb[0].mxu0
    %v372 = vadd.f32 %v295, %v371
    %v373 = vpop.f32.mrb[0].mxu0
    %374 = vdwg.mxu0
    %v375 = vxor.u32 %v372, 2147483648
    %v376 = vmul.f32 %v375, 1.442695
    %v377 = vpow.pop %v376
    %v378 = vadd.f32 %v377, 1.0
    %v379 = vrcp.pop %v378
    %v380 = vmul.f32 1.0, %v379
    %v381 = vlaneseq
    %v382 = vshrl.u32 %v381, 7
    %v383 = vsub.s32 0, %v382
    %v384 = vrot.slane %v380, %v383
    %386 = vbcast.lane.b32.xlu0 %v384, 256
    %v387 = vpop.permute.xlu0 %386
    %s389 = sor.u32 256, 8
    %390 = vbcast.lane.b32.xlu0 %v384, %s389
    %v391 = vpop.permute.xlu0 %390
    %s393 = sor.u32 256, 16
    %394 = vbcast.lane.b32.xlu0 %v384, %s393
    %v395 = vpop.permute.xlu0 %394
    %s397 = sor.u32 256, 24
    %398 = vbcast.lane.b32.xlu0 %v384, %s397
    %v399 = vpop.permute.xlu0 %398
    %v400 = vlaneseq
    %v401 = vshrl.u32 %v400, 7
    %v402 = vsub.s32 1, %v401
    %v403 = vrot.slane %v380, %v402
    %405 = vbcast.lane.b32.xlu0 %v403, 256
    %v406 = vpop.permute.xlu0 %405
    %s408 = sor.u32 256, 8
    %409 = vbcast.lane.b32.xlu0 %v403, %s408
    %v410 = vpop.permute.xlu0 %409
    %s412 = sor.u32 256, 16
    %413 = vbcast.lane.b32.xlu0 %v403, %s412
    %v414 = vpop.permute.xlu0 %413
    %s416 = sor.u32 256, 24
    %417 = vbcast.lane.b32.xlu0 %v403, %s416
    %v418 = vpop.permute.xlu0 %417
    %v419 = vmul.f32 %v100, %v387
    %v420 = vmul.f32 %v101, %v387
    %v421 = vmul.f32 %v102, %v391
    %v422 = vmul.f32 %v103, %v391
    %v423 = vmul.f32 %v104, %v395
    %v424 = vmul.f32 %v105, %v395
    %v425 = vmul.f32 %v106, %v399
    %v426 = vmul.f32 %v107, %v399
    %v427 = vmul.f32 %v108, %v406
    %v428 = vmul.f32 %v109, %v406
    %v429 = vmul.f32 %v110, %v410
    %v430 = vmul.f32 %v111, %v410
    %v431 = vmul.f32 %v112, %v414
    %v432 = vmul.f32 %v113, %v414
    %v433 = vmul.f32 %v114, %v418
    %v434 = vmul.f32 %v115, %v418
    %v435 = vld [vmem:[#allocation5] sm:$0xff]
    %v436 = vld [vmem:[#allocation5 + $0x8] sm:$0xff]
    %v437 = vld [vmem:[#allocation5 + $0x10] sm:$0xff]
    %v438 = vld [vmem:[#allocation5 + $0x18] sm:$0xff]
    %v439 = vld [vmem:[#allocation5 + $0x20] sm:$0xff]
    %v440 = vld [vmem:[#allocation5 + $0x28] sm:$0xff]
    %v441 = vld [vmem:[#allocation5 + $0x30] sm:$0xff]
    %v442 = vld [vmem:[#allocation5 + $0x38] sm:$0xff]
    %v443 = vld [vmem:[#allocation5 + $0x40] sm:$0xff]
    %v444 = vld [vmem:[#allocation5 + $0x48] sm:$0xff]
    %v445 = vld [vmem:[#allocation5 + $0x50] sm:$0xff]
    %v446 = vld [vmem:[#allocation5 + $0x58] sm:$0xff]
    %v447 = vld [vmem:[#allocation5 + $0x60] sm:$0xff]
    %v448 = vld [vmem:[#allocation5 + $0x68] sm:$0xff]
    %v449 = vld [vmem:[#allocation5 + $0x70] sm:$0xff]
    %v450 = vld [vmem:[#allocation5 + $0x78] sm:$0xff]
    %v451 = vadd.f32 %v419, %v435
    %v452 = vadd.f32 %v420, %v436
    %v453 = vadd.f32 %v421, %v437
    %v454 = vadd.f32 %v422, %v438
    %v455 = vadd.f32 %v423, %v439
    %v456 = vadd.f32 %v424, %v440
    %v457 = vadd.f32 %v425, %v441
    %v458 = vadd.f32 %v426, %v442
    %v459 = vadd.f32 %v427, %v443
    %v460 = vadd.f32 %v428, %v444
    %v461 = vadd.f32 %v429, %v445
    %v462 = vadd.f32 %v430, %v446
    %v463 = vadd.f32 %v431, %v447
    %v464 = vadd.f32 %v432, %v448
    %v465 = vadd.f32 %v433, %v449
    %v466 = vadd.f32 %v434, %v450
    %467 = vst [vmem:[#allocation13] sm:$0xff] %v451
    %468 = vst [vmem:[#allocation13 + $0x8] sm:$0xff] %v452
    %469 = vst [vmem:[#allocation13 + $0x10] sm:$0xff] %v453
    %470 = vst [vmem:[#allocation13 + $0x18] sm:$0xff] %v454
    %471 = vst [vmem:[#allocation13 + $0x20] sm:$0xff] %v455
    %472 = vst [vmem:[#allocation13 + $0x28] sm:$0xff] %v456
    %473 = vst [vmem:[#allocation13 + $0x30] sm:$0xff] %v457
    %474 = vst [vmem:[#allocation13 + $0x38] sm:$0xff] %v458
    %475 = vst [vmem:[#allocation13 + $0x40] sm:$0xff] %v459
    %476 = vst [vmem:[#allocation13 + $0x48] sm:$0xff] %v460
    %477 = vst [vmem:[#allocation13 + $0x50] sm:$0xff] %v461
    %478 = vst [vmem:[#allocation13 + $0x58] sm:$0xff] %v462
    %479 = vst [vmem:[#allocation13 + $0x60] sm:$0xff] %v463
    %480 = vst [vmem:[#allocation13 + $0x68] sm:$0xff] %v464
    %481 = vst [vmem:[#allocation13 + $0x70] sm:$0xff] %v465
    %482 = vst [vmem:[#allocation13 + $0x78] sm:$0xff] %v466
    // Predicated region
    $region50: #{tpu_custom_call.1} parent=1 // pred_check
      _
    $region51: #{tpu_custom_call.1} parent=1 // pred_check_branch
      %484 = sbr.rel (0) target = $region53
    $region52: #{tpu_custom_call.1} parent=1 // pred_region
      %s486 = ssub.s32 2048, 2048
      %487 = vsyncadd [#allocation4], %s486
      %s488 = sshll.u32 [#allocation13], 4
      %s489 = int_to_ptr.vmem [resolvable:$true] %s488
      %494 = dma.vmem_to_hbm [thread:$0]  %s489, 2048, %s6, [#allocation4], 256, 256, 16
    $region53: #{tpu_custom_call.1} parent=1 // pred_fallthru
      _
    // Predicated region
    $region54: #{tpu_custom_call.1} parent=1 // pred_check
      _
    $region55: #{tpu_custom_call.1} parent=1 // pred_check_branch
      %496 = sbr.rel (0) target = $region57
    $region56: #{tpu_custom_call.1} parent=1 // pred_region
      %497 = dma.done [#allocation4], 2048
    $region57: #{tpu_custom_call.1} parent=1 // pred_fallthru
      _
    %498 = vsyncpa [#allocation3], 1
    %499 = vsyncpa [#allocation6], 1
    %500 = vsyncpa [#allocation9], 1
    %501 = vsyncpa [#allocation12], 1
    %502 = vsyncpa [#allocation4], 1

</llo_original>
